<compile_context>
chip_gen: v7x
topology: tpu7x:2x2x1
jax: 0.10.0
libtpu: 0.0.40
codegen_flags: <defaults>
</compile_context>

<pallas_src>
import math
from functools import partial

import jax
import jax.numpy as jnp
from jax.experimental import pallas as pl
from jax.experimental.pallas import tpu as pltpu

_EPS = 1e-5
_LANE = 128
# Conservative per-step VMEM working-set budget (bytes): double-buffered
# in+out blocks plus f32 temporaries must fit the smallest scoped-VMEM
# default across v5e / v6e / v7x.
_VMEM_BUDGET = 12 * 1024 * 1024
_VMEM_LIMIT = 32 * 1024 * 1024


def _round_up(x, m):
    return (x + m - 1) // m * m


def _pick_td(d_pad):
    for cand in (512, 256, 128):
        if d_pad % cand == 0:
            return cand
    return d_pad  # unreachable: d_pad is always a multiple of 128


# ----------------------------------------------------------------------------
# Fused path: the whole N-row column strip is resident per grid step.
# ----------------------------------------------------------------------------
def _bn_fused_kernel(x_ref, gamma_ref, beta_ref, o_ref, *, inv_n):
    # x_ref: (N, TD) column strip; gamma/beta: (1, TD).
    x = x_ref[...].astype(jnp.float32)
    s = jnp.sum(x, axis=0, keepdims=True)
    ss = jnp.sum(x * x, axis=0, keepdims=True)
    mean = s * inv_n
    var = jnp.maximum(ss * inv_n - mean * mean, 0.0)  # biased variance
    scale = gamma_ref[...].astype(jnp.float32) * jax.lax.rsqrt(var + _EPS)
    shift = beta_ref[...].astype(jnp.float32) - mean * scale
    o_ref[...] = (x * scale + shift).astype(o_ref.dtype)


# ----------------------------------------------------------------------------
# Two-pass path (large N): pass 1 = per-feature sum / sumsq reduction.
# ----------------------------------------------------------------------------
def _bn_stats_kernel(x_ref, s_ref, ss_ref):
    # grid = (d_tiles, n_tiles); the row (N) axis is last and "arbitrary".
    @pl.when(pl.program_id(1) == 0)
    def _():
        s_ref[...] = jnp.zeros_like(s_ref)
        ss_ref[...] = jnp.zeros_like(ss_ref)

    x = x_ref[...].astype(jnp.float32)
    s_ref[...] += jnp.sum(x, axis=0, keepdims=True)
    ss_ref[...] += jnp.sum(x * x, axis=0, keepdims=True)


def _bn_apply_kernel(x_ref, scale_ref, shift_ref, o_ref):
    x = x_ref[...].astype(jnp.float32)
    o_ref[...] = (x * scale_ref[...] + shift_ref[...]).astype(o_ref.dtype)


# ----------------------------------------------------------------------------
# Wrapper
# ----------------------------------------------------------------------------
def normalization_forward(x, gamma, beta):
    """Training-mode BatchNorm1d over flattened (prod(leading), D) rows
    (biased variance, eps=1e-5, affine), reshaped back to the input shape."""
    orig_shape = x.shape
    D = orig_shape[-1]
    N = 1
    for dim in orig_shape[:-1]:
        N *= dim
    x2 = x.reshape(N, D)

    d_pad = _round_up(max(D, _LANE), _LANE)
    if d_pad != D:
        x2 = jnp.pad(x2, ((0, 0), (0, d_pad - D)))
        gamma_p = jnp.pad(gamma, (0, d_pad - D))
        beta_p = jnp.pad(beta, (0, d_pad - D))
    else:
        gamma_p = gamma
        beta_p = beta
    gamma_p = gamma_p.reshape(1, d_pad)
    beta_p = beta_p.reshape(1, d_pad)

    itemsize = x2.dtype.itemsize

    # Pick the largest lane-dense feature tile whose full-N column strip
    # (double-buffered in+out blocks + f32 temporaries) fits the VMEM budget.
    fused_td = None
    for cand in (512, 256, 128):
        if d_pad % cand == 0 and N * cand * (4 * itemsize + 8) <= _VMEM_BUDGET:
            fused_td = cand
            break

    if fused_td is not None:
        # ------------------------- fused single pass -------------------------
        td = fused_td
        n_td = d_pad // td
        out = pl.pallas_call(
            partial(_bn_fused_kernel, inv_n=1.0 / N),
            out_shape=jax.ShapeDtypeStruct((N, d_pad), x.dtype),
            grid=(n_td,),
            in_specs=[
                pl.BlockSpec((N, td), lambda j: (0, j)),
                pl.BlockSpec((1, td), lambda j: (0, j)),
                pl.BlockSpec((1, td), lambda j: (0, j)),
            ],
            out_specs=pl.BlockSpec((N, td), lambda j: (0, j)),
            compiler_params=pltpu.CompilerParams(
                dimension_semantics=("parallel",),
                vmem_limit_bytes=_VMEM_LIMIT,
            ),
            cost_estimate=pl.CostEstimate(
                flops=7 * N * d_pad,
                transcendentals=d_pad,
                bytes_accessed=(2 * N * d_pad + 2 * d_pad) * itemsize,
            ),
        )(x2, gamma_p, beta_p)
    else:
        # -------------------- two-pass (stats + apply) path ------------------
        td = _pick_td(d_pad)
        n_td = d_pad // td
        tn = 1024 if N >= 1024 else _round_up(N, 8)
        n_pad = _round_up(N, tn)
        if n_pad != N:
            # Zero rows do not perturb sum / sumsq; the true N divides below.
            x2 = jnp.pad(x2, ((0, n_pad - N), (0, 0)))
        n_tn = n_pad // tn

        # Pass 1: per-feature sum and sum-of-squares.
        s, ss = pl.pallas_call(
            _bn_stats_kernel,
            out_shape=(
                jax.ShapeDtypeStruct((1, d_pad), jnp.float32),
                jax.ShapeDtypeStruct((1, d_pad), jnp.float32),
            ),
            grid=(n_td, n_tn),
            in_specs=[pl.BlockSpec((tn, td), lambda j, i: (i, j))],
            out_specs=(
                pl.BlockSpec((1, td), lambda j, i: (0, j)),
                pl.BlockSpec((1, td), lambda j, i: (0, j)),
            ),
            compiler_params=pltpu.CompilerParams(
                dimension_semantics=("parallel", "arbitrary"),
                vmem_limit_bytes=_VMEM_LIMIT,
            ),
            cost_estimate=pl.CostEstimate(
                flops=3 * n_pad * d_pad,
                transcendentals=0,
                bytes_accessed=n_pad * d_pad * itemsize,
            ),
        )(x2)

        # Tiny (D,)-sized fold of the stats into a single scale/shift.
        mean = s * (1.0 / N)
        var = jnp.maximum(ss * (1.0 / N) - mean * mean, 0.0)
        scale = gamma_p.astype(jnp.float32) * jax.lax.rsqrt(var + _EPS)
        shift = beta_p.astype(jnp.float32) - mean * scale

        # Pass 2: y = x * scale + shift.
        out = pl.pallas_call(
            _bn_apply_kernel,
            out_shape=jax.ShapeDtypeStruct((n_pad, d_pad), x.dtype),
            grid=(n_td, n_tn),
            in_specs=[
                pl.BlockSpec((tn, td), lambda j, i: (i, j)),
                pl.BlockSpec((1, td), lambda j, i: (0, j)),
                pl.BlockSpec((1, td), lambda j, i: (0, j)),
            ],
            out_specs=pl.BlockSpec((tn, td), lambda j, i: (i, j)),
            compiler_params=pltpu.CompilerParams(
                dimension_semantics=("parallel", "parallel"),
                vmem_limit_bytes=_VMEM_LIMIT,
            ),
            cost_estimate=pl.CostEstimate(
                flops=2 * n_pad * d_pad,
                transcendentals=0,
                bytes_accessed=2 * n_pad * d_pad * itemsize,
            ),
        )(x2, scale, shift)
        out = out[:N]

    return out[:, :D].reshape(orig_shape)


def _reference(x, gamma, beta):
    D = x.shape[-1]
    x2 = x.reshape(-1, D).astype(jnp.float32)
    mean = x2.mean(axis=0, keepdims=True)
    var = ((x2 - mean) ** 2).mean(axis=0, keepdims=True)
    y = (x2 - mean) * jax.lax.rsqrt(var + _EPS) * gamma + beta
    return y.astype(x.dtype).reshape(x.shape)


if __name__ == "__main__":
    key = jax.random.PRNGKey(0)
    kx, kg, kb, kx2 = jax.random.split(key, 4)

    # Small shapes consistent with the module: (batch, seq, embed_dim).
    B, S, D = 2, 8, 32
    x = jax.random.normal(kx, (B, S, D), dtype=jnp.float32)

    # init_parameters(): uniform(-stdv, stdv) with stdv = 1/sqrt(D)
    stdv = 1.0 / math.sqrt(D)
    gamma = jax.random.uniform(kg, (D,), minval=-stdv, maxval=stdv, dtype=jnp.float32)
    beta = jax.random.uniform(kb, (D,), minval=-stdv, maxval=stdv, dtype=jnp.float32)

    out = normalization_forward(x, gamma, beta)
    jax.block_until_ready(out)
    ref = _reference(x, gamma, beta)
    assert out.shape == x.shape
    assert jnp.allclose(out, ref, atol=2e-4, rtol=2e-4), "fused-path mismatch vs reference"

    # Larger row count to exercise the two-pass (stats + apply) fallback,
    # including row padding (5000 rows -> padded to 5120).
    B2, S2 = 5, 1000
    x_big = jax.random.normal(kx2, (B2, S2, D), dtype=jnp.float32)
    out_big = normalization_forward(x_big, gamma, beta)
    jax.block_until_ready(out_big)
    ref_big = _reference(x_big, gamma, beta)
    assert jnp.allclose(out_big, ref_big, atol=2e-4, rtol=2e-4), "two-pass mismatch vs reference"

    print("KERNEL_OK")
</pallas_src>

<mosaic_0001>
module attributes {stable_mosaic.version = 11 : i64} {
  func.func @_bn_fused_kernel(%arg0: i32, %arg1: memref<16x128xf32, #tpu.memory_space<vmem>>, %arg2: memref<1x128xf32, #tpu.memory_space<vmem>>, %arg3: memref<1x128xf32, #tpu.memory_space<vmem>>, %arg4: memref<16x128xf32, #tpu.memory_space<vmem>>) attributes {dimension_semantics = [#tpu.dimension_semantics<parallel>], iteration_bounds = array<i64: 1>, scalar_prefetch = 0 : i64, scratch_operands = 0 : i64, tpu.core_type = #tpu.core_type<tc>, window_params = [{transform_indices = @transform_0, window_bounds = array<i64: 16, 128>}, {transform_indices = @transform_1, window_bounds = array<i64: 1, 128>}, {transform_indices = @transform_2, window_bounds = array<i64: 1, 128>}, {transform_indices = @transform_3, window_bounds = array<i64: 16, 128>}]} {
    %c0 = arith.constant 0 : index
    %c0_0 = arith.constant 0 : index
    %0 = vector.load %arg1[%c0, %c0_0] : memref<16x128xf32, #tpu.memory_space<vmem>>, vector<16x128xf32>
    %cst = arith.constant dense<0.000000e+00> : vector<128xf32>
    %1 = vector.multi_reduction <add>, %0, %cst [0] : vector<16x128xf32> to vector<128xf32>
    %2 = vector.shape_cast %1 : vector<128xf32> to vector<1x128xf32>
    %3 = arith.mulf %0, %0 : vector<16x128xf32>
    %cst_1 = arith.constant dense<0.000000e+00> : vector<128xf32>
    %4 = vector.multi_reduction <add>, %3, %cst_1 [0] : vector<16x128xf32> to vector<128xf32>
    %5 = vector.shape_cast %4 : vector<128xf32> to vector<1x128xf32>
    %cst_2 = arith.constant 6.250000e-02 : f32
    %6 = vector.broadcast %cst_2 : f32 to vector<1x128xf32>
    %7 = arith.mulf %2, %6 : vector<1x128xf32>
    %cst_3 = arith.constant 6.250000e-02 : f32
    %8 = vector.broadcast %cst_3 : f32 to vector<1x128xf32>
    %9 = arith.mulf %5, %8 : vector<1x128xf32>
    %10 = arith.mulf %7, %7 : vector<1x128xf32>
    %11 = arith.subf %9, %10 : vector<1x128xf32>
    %cst_4 = arith.constant 0.000000e+00 : f32
    %12 = vector.broadcast %cst_4 : f32 to vector<1x128xf32>
    %13 = arith.maximumf %11, %12 : vector<1x128xf32>
    %c0_5 = arith.constant 0 : index
    %c0_6 = arith.constant 0 : index
    %14 = vector.load %arg2[%c0_5, %c0_6] : memref<1x128xf32, #tpu.memory_space<vmem>>, vector<1x128xf32>
    %cst_7 = arith.constant 9.99999974E-6 : f32
    %15 = vector.broadcast %cst_7 : f32 to vector<1x128xf32>
    %16 = arith.addf %13, %15 : vector<1x128xf32>
    %17 = math.rsqrt %16 : vector<1x128xf32>
    %18 = arith.mulf %14, %17 : vector<1x128xf32>
    %c0_8 = arith.constant 0 : index
    %c0_9 = arith.constant 0 : index
    %19 = vector.load %arg3[%c0_8, %c0_9] : memref<1x128xf32, #tpu.memory_space<vmem>>, vector<1x128xf32>
    %20 = arith.mulf %7, %18 : vector<1x128xf32>
    %21 = arith.subf %19, %20 : vector<1x128xf32>
    %22 = vector.broadcast %18 : vector<1x128xf32> to vector<16x128xf32>
    %23 = arith.mulf %0, %22 : vector<16x128xf32>
    %24 = vector.broadcast %21 : vector<1x128xf32> to vector<16x128xf32>
    %25 = arith.addf %23, %24 : vector<16x128xf32>
    %c0_10 = arith.constant 0 : index
    %c0_11 = arith.constant 0 : index
    %26 = vector.load %arg4[%c0_10, %c0_11] : memref<16x128xf32, #tpu.memory_space<vmem>>, vector<16x128xf32>
    tpu.vector_store %arg4[%c0_10, %c0_11], %25 {strides = array<i32>} : memref<16x128xf32, #tpu.memory_space<vmem>>, vector<16x128xf32>,
    return
  }
  func.func @transform_0(%arg0: i32) -> (i32, i32) {
    %c0_i32 = arith.constant 0 : i32
    %c0_i32_0 = arith.constant 0 : i32
    return %c0_i32, %arg0 : i32, i32
  }
  func.func @transform_1(%arg0: i32) -> (i32, i32) {
    %c0_i32 = arith.constant 0 : i32
    %c0_i32_0 = arith.constant 0 : i32
    return %c0_i32, %arg0 : i32, i32
  }
  func.func @transform_2(%arg0: i32) -> (i32, i32) {
    %c0_i32 = arith.constant 0 : i32
    %c0_i32_0 = arith.constant 0 : i32
    return %c0_i32, %arg0 : i32, i32
  }
  func.func @transform_3(%arg0: i32) -> (i32, i32) {
    %c0_i32 = arith.constant 0 : i32
    %c0_i32_0 = arith.constant 0 : i32
    return %c0_i32, %arg0 : i32, i32
  }
}

</mosaic_0001>

<llo_original>
// kernel: tpu_custom_call.1
$region0: #{tpu_custom_call.1}
  #allocation0 [shape = 'u32[]', space=smem, size = 0x4, offset = 0x4, fixed_abs, tag = 'smem constant byte address 0x4 - core index']
  #allocation1 [shape = 'u32[144,128]{1,0:T(1,128)}', space=vmem, size = 0x12000, scoped, tag = 'internal scratch']
  %s0 = inlined_call_operand.hbm [shape: f32[16,128], index: 0, kind: input, shape index: {}]
  %s1 = inlined_call_operand.vmem [shape: f32[1,128], index: 1, kind: input, shape index: {}]
  %s2 = inlined_call_operand.vmem [shape: f32[1,128], index: 2, kind: input, shape index: {}]
  %s3 = inlined_call_operand.hbm [shape: f32[16,128], index: 3, kind: output, shape index: {}]
  %s4 = sld [smem:[#allocation0]]
  $region26: #{tpu_custom_call.1} parent=0
    _
  %s6 = ssub.s32 1, %s4
  %s7 = scalar_select 0, %s6, %s4
  $region1: #{tpu_custom_call.1} parent=0
    #allocation2 [shape = 'u8[8192]{0}', space=vmem, size = 0x2000, scoped, tag = 'input window, operand 0, single buffered']
    #allocation3 [shape = 's32[1]{0}', space=sflag, size = 0x4, scoped, tag = 'scoped memory for tpu_custom_call.1']
    #allocation4 [shape = 's32[1]{0}', space=sflag, size = 0x4, scoped, tag = 'scoped memory for tpu_custom_call.1']
    #allocation5 [shape = 'u8[8192]{0}', space=vmem, size = 0x2000, scoped, tag = 'output window, operand 0, single buffered']
    %8 = vsyncpa [#allocation3], 0
    %9 = vsyncpa [#allocation4], 0
    // Predicated region
    $region2: #{tpu_custom_call.1} parent=1 // pred_check
      _
    $region3: #{tpu_custom_call.1} parent=1 // pred_check_branch
      %11 = sbr.rel (0) target = $region5
    $region4: #{tpu_custom_call.1} parent=1 // pred_region
      %s13 = ssub.s32 256, 256
      %14 = vsyncadd [#allocation3], %s13
      %s15 = sshll.u32 [#allocation2], 4
      %s16 = int_to_ptr.vmem [resolvable:$true] %s15
      %21 = dma.hbm_to_vmem [thread:$0]  %s0, 256, %s16, [#allocation3], 128, 128, 8
    $region5: #{tpu_custom_call.1} parent=1 // pred_fallthru
      _
    // Predicated region
    $region6: #{tpu_custom_call.1} parent=1 // pred_check
      _
    $region7: #{tpu_custom_call.1} parent=1 // pred_check_branch
      %23 = sbr.rel (0) target = $region9
    $region8: #{tpu_custom_call.1} parent=1 // pred_region
      _
    $region9: #{tpu_custom_call.1} parent=1 // pred_fallthru
      _
    // Predicated region
    $region10: #{tpu_custom_call.1} parent=1 // pred_check
      _
    $region11: #{tpu_custom_call.1} parent=1 // pred_check_branch
      %25 = sbr.rel (0) target = $region13
    $region12: #{tpu_custom_call.1} parent=1 // pred_region
      _
    $region13: #{tpu_custom_call.1} parent=1 // pred_fallthru
      _
    // Predicated region
    $region14: #{tpu_custom_call.1} parent=1 // pred_check
      _
    $region15: #{tpu_custom_call.1} parent=1 // pred_check_branch
      %27 = sbr.rel (0) target = $region17
    $region16: #{tpu_custom_call.1} parent=1 // pred_region
      %28 = dma.done [#allocation3], 256
    $region17: #{tpu_custom_call.1} parent=1 // pred_fallthru
      _
    %v29 = vld [vmem:[#allocation2] sm:$0xff]
    %v30 = vld [vmem:[#allocation2 + $0x8] sm:$0xff]
    %v31 = vadd.f32 %v29, %v30
    %v32 = vrot.slane %v31, 4
    %v33 = vadd.f32 %v31, %v32
    %v34 = vrot.slane %v33, 2
    %v35 = vadd.f32 %v33, %v34
    %v36 = vrot.slane %v35, 1
    %v37 = vadd.f32 %v35, %v36
    %v38 = vmul.f32 %v29, %v29
    %v39 = vmul.f32 %v30, %v30
    %v40 = vadd.f32 %v38, %v39
    %v41 = vrot.slane %v40, 4
    %v42 = vadd.f32 %v40, %v41
    %v43 = vrot.slane %v42, 2
    %v44 = vadd.f32 %v42, %v43
    %v45 = vrot.slane %v44, 1
    %v46 = vadd.f32 %v44, %v45
    %v47 = vmul.f32 %v37, 0.0625
    %v48 = vmul.f32 %v46, 0.0625
    %v49 = vmul.f32 %v47, %v47
    %v50 = vsub.f32 %v48, %v49
    %v51 = vmax.f32 %v50, 0.0
    %v52 = vld [vmem:[%s1] sm:$0x1]
    %v53 = vadd.f32 %v51, 1e-05
    %v54 = vrsqrt.pop %v53
    %v55 = vmul.f32 %v52, %v54
    %v56 = vld [vmem:[%s2] sm:$0x1]
    %v57 = vmul.f32 %v47, %v55
    %v58 = vsub.f32 %v56, %v57
    %v60 = vlaneseq
    %v61 = vshrl.u32 %v60, 7
    %v62 = vsub.s32 0, %v61
    %v63 = vrot.slane %v55, %v62
    %v65 = vmul.f32 %v29, %v63
    %v66 = vmul.f32 %v30, %v63
    %v68 = vlaneseq
    %v69 = vshrl.u32 %v68, 7
    %v70 = vsub.s32 0, %v69
    %v71 = vrot.slane %v58, %v70
    %v73 = vadd.f32 %v65, %v71
    %v74 = vadd.f32 %v66, %v71
    %75 = vst [vmem:[#allocation5] sm:$0xff] %v73
    %76 = vst [vmem:[#allocation5 + $0x8] sm:$0xff] %v74
    // Predicated region
    $region18: #{tpu_custom_call.1} parent=1 // pred_check
      _
    $region19: #{tpu_custom_call.1} parent=1 // pred_check_branch
      %78 = sbr.rel (0) target = $region21
    $region20: #{tpu_custom_call.1} parent=1 // pred_region
      %s80 = ssub.s32 256, 256
      %81 = vsyncadd [#allocation4], %s80
      %s82 = sshll.u32 [#allocation5], 4
      %s83 = int_to_ptr.vmem [resolvable:$true] %s82
      %88 = dma.vmem_to_hbm [thread:$0]  %s83, 256, %s3, [#allocation4], 128, 128, 8
    $region21: #{tpu_custom_call.1} parent=1 // pred_fallthru
      _
    // Predicated region
    $region22: #{tpu_custom_call.1} parent=1 // pred_check
      _
    $region23: #{tpu_custom_call.1} parent=1 // pred_check_branch
      %90 = sbr.rel (0) target = $region25
    $region24: #{tpu_custom_call.1} parent=1 // pred_region
      %91 = dma.done [#allocation4], 256
    $region25: #{tpu_custom_call.1} parent=1 // pred_fallthru
      _
    %92 = vsyncpa [#allocation3], 1
    %93 = vsyncpa [#allocation4], 1

</llo_original>
